<compile_context>
chip_gen: v7x
topology: tpu7x:2x2x1
jax: 0.10.0
libtpu: 0.0.40
codegen_flags: <defaults>
</compile_context>

<pallas_src>
import numpy as np

import jax
import jax.numpy as jnp
from jax.experimental import pallas as pl
from jax.experimental.pallas import tpu as pltpu


def _round_up(x, m):
    return ((x + m - 1) // m) * m


def _vmem_capacity_bytes():
    """Best-effort physical VMEM query; conservative (v7x) fallback."""
    try:
        info = pltpu.get_tpu_info()
        cap = getattr(info, "vmem_capacity_bytes", None)
        if cap:
            return int(cap)
    except Exception:
        pass
    return 64 * 1024 * 1024


# ----------------------------------------------------------------------------
# Parameter construction (deterministic numpy glue).
# ----------------------------------------------------------------------------
def _hz_to_octs(freqs, tuning=0.0, bins_per_octave=12):
    a440 = 440.0 * 2.0 ** (tuning / bins_per_octave)
    return np.log2(freqs / (a440 / 16.0))


def chroma_filterbank(sample_rate, n_freqs, n_chroma, *, tuning=0.0, ctroct=5.0,
                      octwidth=2.0, norm=2, base_c=True):
    """Numpy port of torchaudio.prototype.functional.chroma_filterbank."""
    freqs = np.linspace(0.0, sample_rate // 2, n_freqs, dtype=np.float64)[1:]
    freq_bins = n_chroma * _hz_to_octs(freqs, tuning=tuning, bins_per_octave=n_chroma)
    freq_bins = np.concatenate(([freq_bins[0] - 1.5 * n_chroma], freq_bins))
    freq_bin_widths = np.concatenate(
        (np.maximum(freq_bins[1:] - freq_bins[:-1], 1.0), [1.0])
    )

    # (n_freqs, n_chroma)
    D = freq_bins[:, None] - np.arange(0, n_chroma)[None, :]
    n_chroma2 = round(n_chroma / 2)
    D = np.remainder(D + n_chroma2, n_chroma) - n_chroma2

    fb = np.exp(-0.5 * (2 * D / np.tile(freq_bin_widths[:, None], (1, n_chroma))) ** 2)

    # F.normalize(fb, p=norm, dim=1)
    row_norm = np.maximum(
        np.sum(np.abs(fb) ** norm, axis=1, keepdims=True) ** (1.0 / norm), 1e-12
    )
    fb = fb / row_norm

    if octwidth is not None:
        fb = fb * np.exp(-0.5 * (((freq_bins[:, None] / n_chroma - ctroct) / octwidth) ** 2))

    if base_c:
        fb = np.roll(fb, -3 * (n_chroma // 12), axis=1)

    return fb.astype(np.float32)


def hann_window(win_length):
    n = np.arange(win_length, dtype=np.float64)
    return (0.5 - 0.5 * np.cos(2.0 * np.pi * n / win_length)).astype(np.float32)


def windowed_dft_basis(n_fft, window):
    """Real / imag DFT basis pre-multiplied by the analysis window.

    cos_b[n, f] =  w[n] * cos(2*pi*f*n/n_fft)
    sin_b[n, f] = -w[n] * sin(2*pi*f*n/n_fft)
    so that  frames @ (cos_b + i*sin_b) == rfft(frames * w).
    """
    n_freqs = n_fft // 2 + 1
    n = np.arange(n_fft, dtype=np.float64)[:, None]
    f = np.arange(n_freqs, dtype=np.float64)[None, :]
    ang = 2.0 * np.pi * n * f / n_fft
    cos_b = (window[:, None].astype(np.float64) * np.cos(ang)).astype(np.float32)
    sin_b = (-window[:, None].astype(np.float64) * np.sin(ang)).astype(np.float32)
    return cos_b, sin_b


# ----------------------------------------------------------------------------
# Tile selection against a generation-aware VMEM budget.
# ----------------------------------------------------------------------------
def _select_tiles(n_fft, W0, C, budget, wt_bytes):
    """Pick (tile_m, tile_w). Prefers large tile_m (MXU feed), then large tile_w."""
    def step_bytes(tm, tw):
        frames = 2 * tm * n_fft * 4          # double-buffered f32 frame tile
        basis = 2 * n_fft * tw * wt_bytes    # double-buffered basis tile
        fbw = 2 * tw * C * wt_bytes          # double-buffered filterbank tile
        out = 2 * tm * C * 4                 # double-buffered output tile
        acc = tm * C * 4                     # accumulator scratch
        interm = 2 * tm * tw * 4             # p and p*p f32 intermediates
        return frames + basis + fbw + out + acc + interm

    cand = {W0 // 2, W0 // 4, 2048, 1024, 512, 256}
    tw_cands = [W0] + sorted(
        [t for t in cand if 0 < t < W0 and W0 % t == 0 and t % 128 == 0],
        reverse=True,
    )
    for tm in (512, 256, 128, 64, 32, 16, 8):
        for tw in tw_cands:
            if step_bytes(tm, tw) <= budget:
                return tm, tw
    return 8, tw_cands[-1]


# ----------------------------------------------------------------------------
# Pallas kernel: fused (windowed DFT -> power -> chroma projection),
# reduced over the basis-width grid axis into a VMEM accumulator.
# ----------------------------------------------------------------------------
def _chroma_kernel(frames_ref, basis_ref, fb_ref, out_ref, acc_ref):
    # frames : [TM, n_fft]  (f32)
    # basis  : [n_fft, TW]  windowed [cos | -sin] real-DFT basis slice
    # fb     : [TW, Cp]     stacked chroma filterbank slice (power folds in)
    # acc    : [TM, Cp]     f32 accumulator over the W axis
    w = pl.program_id(1)

    @pl.when(w == 0)
    def _init():
        acc_ref[...] = jnp.zeros_like(acc_ref)

    f = frames_ref[...].astype(basis_ref.dtype)
    p = jnp.dot(f, basis_ref[...], preferred_element_type=jnp.float32)   # [TM, TW]
    pp = (p * p).astype(fb_ref.dtype)
    acc_ref[...] += jnp.dot(pp, fb_ref[...], preferred_element_type=jnp.float32)

    @pl.when(w == pl.num_programs(1) - 1)
    def _store():
        out_ref[...] = acc_ref[...].astype(out_ref.dtype)


def chroma_from_frames(frames, basis, fb2, n_chroma, tile_m_max, tile_w, vmem_limit):
    """frames: [M, n_fft] -> chroma [M, n_chroma] via one fused Pallas kernel."""
    M, n_fft = frames.shape
    W = basis.shape[1]          # padded 2 * Fp
    C = fb2.shape[1]            # lane-padded chroma width (>= 128)

    m8 = _round_up(max(M, 1), 8)
    tile_m = min(tile_m_max, m8)           # don't over-pad tiny M
    if tile_m == m8 and tile_m > 256:
        # Split into >=2 M-steps so a 2-TC part (v7x) can shard the parallel axis.
        tile_m = _round_up((tile_m + 1) // 2, 8)

    Mp = _round_up(M, tile_m)
    frames_p = jnp.pad(frames, ((0, Mp - M), (0, 0)))

    grid = (Mp // tile_m, W // tile_w)

    out = pl.pallas_call(
        _chroma_kernel,
        out_shape=jax.ShapeDtypeStruct((Mp, C), jnp.float32),
        grid=grid,
        in_specs=[
            pl.BlockSpec((tile_m, n_fft), lambda i, w: (i, 0)),
            pl.BlockSpec((n_fft, tile_w), lambda i, w: (0, w)),
            pl.BlockSpec((tile_w, C), lambda i, w: (w, 0)),
        ],
        out_specs=pl.BlockSpec((tile_m, C), lambda i, w: (i, 0)),
        scratch_shapes=[pltpu.VMEM((tile_m, C), jnp.float32)],
        compiler_params=pltpu.CompilerParams(
            dimension_semantics=("parallel", "arbitrary"),
            vmem_limit_bytes=int(vmem_limit),
        ),
    )(frames_p, basis, fb2)
    return out[:M, :n_chroma]


# ----------------------------------------------------------------------------
# ChromaSpectrogram wrapper (framing / padding glue in plain JAX).
# ----------------------------------------------------------------------------
class ChromaSpectrogramPallas:
    def __init__(self, sample_rate, n_fft, *, win_length=None, hop_length=None,
                 n_chroma=12, tuning=0.0, ctroct=5.0, octwidth=2.0, norm=2,
                 base_c=True, compute_dtype=jnp.float32):
        win_length = win_length if win_length is not None else n_fft
        hop_length = hop_length if hop_length is not None else win_length // 2
        assert win_length == n_fft, "window is padded to n_fft; kept equal here"
        self.n_fft = n_fft
        self.hop = hop_length
        self.n_freqs = n_fft // 2 + 1
        self.n_chroma = n_chroma
        self.compute_dtype = jnp.dtype(compute_dtype)

        window = hann_window(win_length)
        cos_b, sin_b = windowed_dft_basis(n_fft, window)
        fb = chroma_filterbank(sample_rate, self.n_freqs, n_chroma, tuning=tuning,
                               ctroct=ctroct, octwidth=octwidth, norm=norm,
                               base_c=base_c)

        # Lane-pad n_freqs -> Fp (multiple of 128) and n_chroma -> Cp (>=128);
        # concatenate cos|sin into one wide basis and stack fb twice so
        # power = re^2 + im^2 folds into the second matmul exactly.
        Fp = _round_up(self.n_freqs, 128)
        Cp = _round_up(max(n_chroma, 128), 128)
        W0 = 2 * Fp

        # --- generation-aware VMEM budgeting ------------------------------
        vmem_cap = _vmem_capacity_bytes()
        vmem_limit = min(int(vmem_cap * 0.7), vmem_cap - (16 << 20))
        vmem_limit = max(vmem_limit, 16 << 20)
        self.vmem_limit = int(vmem_limit)
        budget = int(self.vmem_limit * 0.7)   # headroom for Mosaic internals

        wt_bytes = 2 if self.compute_dtype == jnp.bfloat16 else 4
        self.tile_m_max, self.tile_w = _select_tiles(n_fft, W0, Cp, budget, wt_bytes)

        cos_p = np.zeros((n_fft, Fp), np.float32)
        sin_p = np.zeros((n_fft, Fp), np.float32)
        cos_p[:, : self.n_freqs] = cos_b
        sin_p[:, : self.n_freqs] = sin_b
        basis = np.concatenate([cos_p, sin_p], axis=1)           # [n_fft, W0]
        fb_p = np.zeros((Fp, Cp), np.float32)
        fb_p[: self.n_freqs, :n_chroma] = fb
        fb2 = np.concatenate([fb_p, fb_p], axis=0)               # [W0, Cp]

        self.basis = jnp.asarray(basis, dtype=self.compute_dtype)
        self.fb2 = jnp.asarray(fb2, dtype=self.compute_dtype)
        self.fb = jnp.asarray(fb)                                # unpadded f32 (reference)

    def _frame(self, x):
        """x: [B, Lp] (already reflect-padded) -> frames [B, n_frames, n_fft]."""
        B, Lp = x.shape
        n_frames = 1 + (Lp - self.n_fft) // self.hop
        if self.n_fft % self.hop == 0:
            # No gather: build overlapping frames from hop-sized chunks
            # (default torchaudio hop = n_fft // 2 -> ratio == 2).
            ratio = self.n_fft // self.hop
            n_chunks = n_frames - 1 + ratio
            chunks = x[:, : n_chunks * self.hop].reshape(B, n_chunks, self.hop)
            frames = jnp.concatenate(
                [chunks[:, j : j + n_frames] for j in range(ratio)], axis=-1
            )
        else:
            idx = (jnp.arange(n_frames)[:, None] * self.hop
                   + jnp.arange(self.n_fft)[None, :])
            frames = x[:, idx]
        return frames, n_frames

    def __call__(self, waveform):
        """waveform: (..., time) -> chromagram (..., n_chroma, n_frames)."""
        lead = waveform.shape[:-1]
        L = waveform.shape[-1]
        assert L > self.n_fft // 2, "reflect pad requires time > n_fft // 2"
        x = waveform.reshape((-1, L)).astype(jnp.float32)

        # center=True, pad_mode='reflect'
        p = self.n_fft // 2
        x = jnp.pad(x, ((0, 0), (p, p)), mode="reflect")

        frames, n_frames = self._frame(x)                         # [B, T, n_fft]
        B = frames.shape[0]
        frames_2d = frames.reshape((B * n_frames, self.n_fft))    # [M, n_fft]

        chroma = chroma_from_frames(frames_2d, self.basis, self.fb2, self.n_chroma,
                                    self.tile_m_max, self.tile_w, self.vmem_limit)
        chroma = chroma.reshape((B, n_frames, self.n_chroma))
        chroma = jnp.swapaxes(chroma, -1, -2)                     # (B, n_chroma, T)
        return chroma.reshape(lead + (self.n_chroma, n_frames))


# ----------------------------------------------------------------------------
# Pure-JAX reference for correctness check.
# ----------------------------------------------------------------------------
def reference(waveform, mod: ChromaSpectrogramPallas):
    lead = waveform.shape[:-1]
    L = waveform.shape[-1]
    x = waveform.reshape((-1, L)).astype(jnp.float32)
    p = mod.n_fft // 2
    x = jnp.pad(x, ((0, 0), (p, p)), mode="reflect")
    n_frames = 1 + (x.shape[-1] - mod.n_fft) // mod.hop
    idx = jnp.arange(n_frames)[:, None] * mod.hop + jnp.arange(mod.n_fft)[None, :]
    frames = x[:, idx]                                             # [B, T, n_fft]
    window = jnp.asarray(hann_window(mod.n_fft))
    spec = jnp.fft.rfft(frames * window, axis=-1)
    power = jnp.abs(spec) ** 2                                     # [B, T, n_freqs]
    chroma = jnp.einsum("btf,fc->btc", power, mod.fb)
    chroma = jnp.swapaxes(chroma, -1, -2)
    return chroma.reshape(lead + (mod.n_chroma, n_frames))


if __name__ == "__main__":
    key = jax.random.PRNGKey(0)
    batch, n_samples = 2, 256
    sample_rate, n_fft = 16000, 64

    waveform = jax.random.normal(key, (batch, n_samples), dtype=jnp.float32)

    # Default f32 path: matches the torch module numerics.
    mod = ChromaSpectrogramPallas(sample_rate, n_fft)
    out = jax.block_until_ready(mod(waveform))

    ref = jax.block_until_ready(reference(waveform, mod))
    expected_frames = 1 + n_samples // (n_fft // 2)
    assert out.shape == ref.shape == (batch, 12, expected_frames), out.shape
    np.testing.assert_allclose(np.asarray(out), np.asarray(ref), rtol=2e-3, atol=2e-3)

    # Optional fast path: bf16 MXU operands with f32 accumulation (looser check).
    mod_bf16 = ChromaSpectrogramPallas(sample_rate, n_fft, compute_dtype=jnp.bfloat16)
    out_bf16 = jax.block_until_ready(mod_bf16(waveform))
    assert out_bf16.shape == ref.shape, out_bf16.shape
    rel = (np.linalg.norm(np.asarray(out_bf16, np.float64) - np.asarray(ref, np.float64))
           / np.linalg.norm(np.asarray(ref, np.float64)))
    assert rel < 3e-2, f"bf16 path relative L2 error too large: {rel}"

    print("KERNEL_OK")
</pallas_src>

<mosaic_0001>
module attributes {stable_mosaic.version = 11 : i64} {
  func.func @_chroma_kernel(%arg0: i32, %arg1: i32, %arg2: memref<24x64xf32, #tpu.memory_space<vmem>>, %arg3: memref<64x256xf32, #tpu.memory_space<vmem>>, %arg4: memref<256x128xf32, #tpu.memory_space<vmem>>, %arg5: memref<24x128xf32, #tpu.memory_space<vmem>>, %arg6: memref<24x128xf32, #tpu.memory_space<vmem>>) attributes {dimension_semantics = [#tpu.dimension_semantics<parallel>, #tpu.dimension_semantics<arbitrary>], iteration_bounds = array<i64: 1, 1>, scalar_prefetch = 0 : i64, scratch_operands = 1 : i64, tpu.core_type = #tpu.core_type<tc>, window_params = [{transform_indices = @transform_0, window_bounds = array<i64: 24, 64>}, {transform_indices = @transform_1, window_bounds = array<i64: 64, 256>}, {transform_indices = @transform_2, window_bounds = array<i64: 256, 128>}, {transform_indices = @transform_3, window_bounds = array<i64: 24, 128>}]} {
    %c0_i32 = arith.constant 0 : i32
    %0 = arith.cmpi eq, %arg1, %c0_i32 : i32
    %1 = arith.extui %0 : i1 to i32
    %c0_i32_0 = arith.constant 0 : i32
    %2 = arith.cmpi ne, %1, %c0_i32_0 : i32
    scf.if %2 {
      %cst_13 = arith.constant 0.000000e+00 : f32
      %15 = vector.broadcast %cst_13 : f32 to vector<24x128xf32>
      %c0_14 = arith.constant 0 : index
      %c0_15 = arith.constant 0 : index
      %16 = vector.load %arg6[%c0_14, %c0_15] : memref<24x128xf32, #tpu.memory_space<vmem>>, vector<24x128xf32>
      tpu.vector_store %arg6[%c0_14, %c0_15], %15 {strides = array<i32>} : memref<24x128xf32, #tpu.memory_space<vmem>>, vector<24x128xf32>,
    } else {
    }
    %c0 = arith.constant 0 : index
    %c0_1 = arith.constant 0 : index
    %3 = vector.load %arg2[%c0, %c0_1] : memref<24x64xf32, #tpu.memory_space<vmem>>, vector<24x64xf32>
    %c0_2 = arith.constant 0 : index
    %c0_3 = arith.constant 0 : index
    %4 = vector.load %arg3[%c0_2, %c0_3] : memref<64x256xf32, #tpu.memory_space<vmem>>, vector<64x256xf32>
    %cst = arith.constant dense<0.000000e+00> : vector<24x256xf32>
    %5 = tpu.matmul %3, %4, %cst {dimension_numbers = #tpu.dot_dimension_numbers<[1], [0], [0], [1], [0, 0, 1, 1], [], []>} : vector<24x64xf32>, vector<64x256xf32>, vector<24x256xf32> -> vector<24x256xf32>
    %6 = arith.mulf %5, %5 : vector<24x256xf32>
    %c0_4 = arith.constant 0 : index
    %c0_5 = arith.constant 0 : index
    %7 = vector.load %arg6[%c0_4, %c0_5] : memref<24x128xf32, #tpu.memory_space<vmem>>, vector<24x128xf32>
    %c0_6 = arith.constant 0 : index
    %c0_7 = arith.constant 0 : index
    %8 = vector.load %arg4[%c0_6, %c0_7] : memref<256x128xf32, #tpu.memory_space<vmem>>, vector<256x128xf32>
    %cst_8 = arith.constant dense<0.000000e+00> : vector<24x128xf32>
    %9 = tpu.matmul %6, %8, %cst_8 {dimension_numbers = #tpu.dot_dimension_numbers<[1], [0], [0], [1], [0, 0, 1, 1], [], []>} : vector<24x256xf32>, vector<256x128xf32>, vector<24x128xf32> -> vector<24x128xf32>
    %10 = arith.addf %7, %9 : vector<24x128xf32>
    %c0_9 = arith.constant 0 : index
    %c0_10 = arith.constant 0 : index
    %11 = vector.load %arg6[%c0_9, %c0_10] : memref<24x128xf32, #tpu.memory_space<vmem>>, vector<24x128xf32>
    tpu.vector_store %arg6[%c0_9, %c0_10], %10 {strides = array<i32>} : memref<24x128xf32, #tpu.memory_space<vmem>>, vector<24x128xf32>,
    %c0_i32_11 = arith.constant 0 : i32
    %12 = arith.cmpi eq, %arg1, %c0_i32_11 : i32
    %13 = arith.extui %12 : i1 to i32
    %c0_i32_12 = arith.constant 0 : i32
    %14 = arith.cmpi ne, %13, %c0_i32_12 : i32
    scf.if %14 {
      %c0_13 = arith.constant 0 : index
      %c0_14 = arith.constant 0 : index
      %15 = vector.load %arg6[%c0_13, %c0_14] : memref<24x128xf32, #tpu.memory_space<vmem>>, vector<24x128xf32>
      %c0_15 = arith.constant 0 : index
      %c0_16 = arith.constant 0 : index
      %16 = vector.load %arg5[%c0_15, %c0_16] : memref<24x128xf32, #tpu.memory_space<vmem>>, vector<24x128xf32>
      tpu.vector_store %arg5[%c0_15, %c0_16], %15 {strides = array<i32>} : memref<24x128xf32, #tpu.memory_space<vmem>>, vector<24x128xf32>,
    } else {
    }
    return
  }
  func.func @transform_0(%arg0: i32, %arg1: i32) -> (i32, i32) {
    %c0_i32 = arith.constant 0 : i32
    %c0_i32_0 = arith.constant 0 : i32
    return %arg0, %c0_i32 : i32, i32
  }
  func.func @transform_1(%arg0: i32, %arg1: i32) -> (i32, i32) {
    %c0_i32 = arith.constant 0 : i32
    %c0_i32_0 = arith.constant 0 : i32
    return %c0_i32, %arg1 : i32, i32
  }
  func.func @transform_2(%arg0: i32, %arg1: i32) -> (i32, i32) {
    %c0_i32 = arith.constant 0 : i32
    %c0_i32_0 = arith.constant 0 : i32
    return %arg1, %c0_i32 : i32, i32
  }
  func.func @transform_3(%arg0: i32, %arg1: i32) -> (i32, i32) {
    %c0_i32 = arith.constant 0 : i32
    %c0_i32_0 = arith.constant 0 : i32
    return %arg0, %c0_i32 : i32, i32
  }
}

</mosaic_0001>

<llo_original>
// kernel: tpu_custom_call.1
$region0: #{tpu_custom_call.1}
  #allocation0 [shape = 'u32[]', space=smem, size = 0x4, offset = 0x4, fixed_abs, tag = 'smem constant byte address 0x4 - core index']
  #allocation1 [shape = 'u32[144,128]{1,0:T(1,128)}', space=vmem, size = 0x12000, scoped, tag = 'internal scratch']
  #allocation2 [shape = 'f32[24,128]{1,0:T(8,128)}', space=vmem, size = 0x3000, scoped, tag = 'scratch operand']
  %s0 = inlined_call_operand.hbm [shape: f32[24,64], index: 0, kind: input, shape index: {}]
  %s1 = inlined_call_operand.hbm [shape: f32[64,256], index: 1, kind: input, shape index: {}]
  %s2 = inlined_call_operand.hbm [shape: f32[256,128], index: 2, kind: input, shape index: {}]
  %s3 = inlined_call_operand.hbm [shape: f32[24,128], index: 3, kind: output, shape index: {}]
  %s4 = sld [smem:[#allocation0]]
  $region42: #{tpu_custom_call.1} parent=0
    _
  %s6 = ssub.s32 1, %s4
  %s7 = scalar_select 0, %s6, %s4
  $region1: #{tpu_custom_call.1} parent=0
    #allocation3 [shape = 'u8[12288]{0}', space=vmem, size = 0x3000, scoped, tag = 'input window, operand 0, single buffered']
    #allocation4 [shape = 's32[1]{0}', space=sflag, size = 0x4, scoped, tag = 'scoped memory for tpu_custom_call.1']
    #allocation5 [shape = 's32[1]{0}', space=sflag, size = 0x4, scoped, tag = 'scoped memory for tpu_custom_call.1']
    #allocation6 [shape = 'u8[65536]{0}', space=vmem, size = 0x10000, scoped, tag = 'input window, operand 1, single buffered']
    #allocation7 [shape = 's32[1]{0}', space=sflag, size = 0x4, scoped, tag = 'scoped memory for tpu_custom_call.1']
    #allocation8 [shape = 'u8[131072]{0}', space=vmem, size = 0x20000, scoped, tag = 'input window, operand 2, single buffered']
    #allocation9 [shape = 'u8[12288]{0}', space=vmem, size = 0x3000, scoped, tag = 'output window, operand 0, single buffered']
    %8 = vsyncpa [#allocation4], 0
    %9 = vsyncpa [#allocation7], 0
    %10 = vsyncpa [#allocation5], 0
    // Predicated region
    $region2: #{tpu_custom_call.1} parent=1 // pred_check
      _
    $region3: #{tpu_custom_call.1} parent=1 // pred_check_branch
      %12 = sbr.rel (0) target = $region5
    $region4: #{tpu_custom_call.1} parent=1 // pred_region
      %s14 = ssub.s32 384, 384
      %15 = vsyncadd [#allocation4], %s14
      %s16 = sshll.u32 [#allocation3], 4
      %s17 = int_to_ptr.vmem [resolvable:$true] %s16
      %22 = dma.hbm_to_vmem [thread:$0]  %s0, 384, %s17, [#allocation4], 128, 128, 8
    $region5: #{tpu_custom_call.1} parent=1 // pred_fallthru
      _
    // Predicated region
    $region6: #{tpu_custom_call.1} parent=1 // pred_check
      _
    $region7: #{tpu_custom_call.1} parent=1 // pred_check_branch
      %24 = sbr.rel (0) target = $region9
    $region8: #{tpu_custom_call.1} parent=1 // pred_region
      %s26 = ssub.s32 2048, 2048
      %27 = vsyncadd [#allocation7], %s26
      %s28 = sshll.u32 [#allocation6], 4
      %s29 = int_to_ptr.vmem [resolvable:$true] %s28
      %34 = dma.hbm_to_vmem [thread:$0]  %s1, 2048, %s29, [#allocation7], 256, 256, 16
    $region9: #{tpu_custom_call.1} parent=1 // pred_fallthru
      _
    // Predicated region
    $region10: #{tpu_custom_call.1} parent=1 // pred_check
      _
    $region11: #{tpu_custom_call.1} parent=1 // pred_check_branch
      %36 = sbr.rel (0) target = $region13
    $region12: #{tpu_custom_call.1} parent=1 // pred_region
      %s38 = ssub.s32 4096, 4096
      %39 = vsyncadd [#allocation7], %s38
      %s40 = sshll.u32 [#allocation8], 4
      %s41 = int_to_ptr.vmem [resolvable:$true] %s40
      %46 = dma.hbm_to_vmem [thread:$0]  %s2, 4096, %s41, [#allocation7], 128, 128, 8
    $region13: #{tpu_custom_call.1} parent=1 // pred_fallthru
      _
    // Predicated region
    $region14: #{tpu_custom_call.1} parent=1 // pred_check
      _
    $region15: #{tpu_custom_call.1} parent=1 // pred_check_branch
      %48 = sbr.rel (0) target = $region17
    $region16: #{tpu_custom_call.1} parent=1 // pred_region
      %49 = dma.done [#allocation4], 384
    $region17: #{tpu_custom_call.1} parent=1 // pred_fallthru
      _
    // Predicated region
    $region18: #{tpu_custom_call.1} parent=1 // pred_check
      _
    $region19: #{tpu_custom_call.1} parent=1 // pred_check_branch
      %51 = sbr.rel (0) target = $region21
    $region20: #{tpu_custom_call.1} parent=1 // pred_region
      %52 = dma.done [#allocation7], 2048
    $region21: #{tpu_custom_call.1} parent=1 // pred_fallthru
      _
    // Predicated region
    $region22: #{tpu_custom_call.1} parent=1 // pred_check
      _
    $region23: #{tpu_custom_call.1} parent=1 // pred_check_branch
      %54 = sbr.rel (0) target = $region25
    $region24: #{tpu_custom_call.1} parent=1 // pred_region
      %55 = dma.done [#allocation7], 4096
    $region25: #{tpu_custom_call.1} parent=1 // pred_fallthru
      _
    %p56 = scmp.eq.s32.totalorder 0, 0
    // Predicated region
    $region26: #{tpu_custom_call.1} parent=1 // pred_check
      %p57 = pneg %p56
    $region27: #{tpu_custom_call.1} parent=1 // pred_check_branch
      %59 = sbr.rel (%p57) target = $region29
    $region28: #{tpu_custom_call.1} parent=1 // pred_region
      %60 = vst [vmem:[#allocation2] sm:$0xff] 0.0
      %61 = vst [vmem:[#allocation2 + $0x8] sm:$0xff] 0.0
      %62 = vst [vmem:[#allocation2 + $0x10] sm:$0xff] 0.0
    $region29: #{tpu_custom_call.1} parent=1 // pred_fallthru
      _
    %v63 = vld [vmem:[#allocation3] sm:$0xff]
    %v64 = vld [vmem:[#allocation3 + $0x8] sm:$0xff]
    %v65 = vld [vmem:[#allocation3 + $0x10] sm:$0xff]
    %v66 = vld [vmem:[#allocation6] sm:$0xff]
    %v67 = vld [vmem:[#allocation6 + $0x8] sm:$0xff]
    %v68 = vld [vmem:[#allocation6 + $0x10] sm:$0xff]
    %v69 = vld [vmem:[#allocation6 + $0x18] sm:$0xff]
    %v70 = vld [vmem:[#allocation6 + $0x20] sm:$0xff]
    %v71 = vld [vmem:[#allocation6 + $0x28] sm:$0xff]
    %v72 = vld [vmem:[#allocation6 + $0x30] sm:$0xff]
    %v73 = vld [vmem:[#allocation6 + $0x38] sm:$0xff]
    %v74 = vld [vmem:[#allocation6 + $0x40] sm:$0xff]
    %v75 = vld [vmem:[#allocation6 + $0x48] sm:$0xff]
    %v76 = vld [vmem:[#allocation6 + $0x50] sm:$0xff]
    %v77 = vld [vmem:[#allocation6 + $0x58] sm:$0xff]
    %v78 = vld [vmem:[#allocation6 + $0x60] sm:$0xff]
    %v79 = vld [vmem:[#allocation6 + $0x68] sm:$0xff]
    %v80 = vld [vmem:[#allocation6 + $0x70] sm:$0xff]
    %v81 = vld [vmem:[#allocation6 + $0x78] sm:$0xff]
    %vm82 = vcmask 523264
    %v84 = vsel %vm82, %v63, 0
    %v87 = vsel %vm82, %v64, 0
    %v90 = vsel %vm82, %v65, 0
    %92 = vmatprep.subr.mxu0 %v67
    %93 = vmatpush1.msra.mxu0 %v66
    %94 = vmatprep.subr.mxu0 %v69
    %95 = vmatpush1.msra.mxu0 %v68
    %96 = vmatprep.subr.mxu0 %v71
    %97 = vmatpush1.msra.mxu0 %v70
    %98 = vmatprep.subr.mxu0 %v73
    %99 = vmatpush1.msra.mxu0 %v72
    %100 = vmatprep.subr.mxu0 %v75
    %101 = vmatpush1.msra.mxu0 %v74
    %102 = vmatprep.subr.mxu0 %v77
    %103 = vmatpush1.msra.mxu0 %v76
    %104 = vmatprep.subr.mxu0 %v79
    %105 = vmatpush1.msra.mxu0 %v78
    %106 = vmatprep.subr.mxu0 %v81
    %107 = vmatpush1.msra.mxu0 %v80
    %108 = vmatprep.subr.mxu0 0.0
    %109 = vmatpush1.msra.mxu0 0.0
    %110 = vmatprep.subr.mxu0 0.0
    %111 = vmatpush1.msra.mxu0 0.0
    %112 = vmatprep.subr.mxu0 0.0
    %113 = vmatpush1.msra.mxu0 0.0
    %114 = vmatprep.subr.mxu0 0.0
    %115 = vmatpush1.msra.mxu0 0.0
    %116 = vmatprep.subr.mxu0 0.0
    %117 = vmatpush1.msra.mxu0 0.0
    %118 = vmatprep.subr.mxu0 0.0
    %119 = vmatpush1.msra.mxu0 0.0
    %120 = vmatprep.subr.mxu0 0.0
    %121 = vmatpush1.msra.mxu0 0.0
    %122 = vmatprep.subr.mxu0 0.0
    %123 = vmatpush1.msra.mxu0 0.0
    %124 = vmatprep.subr.mxu0 0.0
    %125 = vmatpush1.msra.mxu0 0.0
    %126 = vmatprep.subr.mxu0 0.0
    %127 = vmatpush1.msra.mxu0 0.0
    %128 = vmatprep.subr.mxu0 0.0
    %129 = vmatpush1.msra.mxu0 0.0
    %130 = vmatprep.subr.mxu0 0.0
    %131 = vmatpush1.msra.mxu0 0.0
    %132 = vmatprep.subr.mxu0 0.0
    %133 = vmatpush1.msra.mxu0 0.0
    %134 = vmatprep.subr.mxu0 0.0
    %135 = vmatpush1.msra.mxu0 0.0
    %136 = vmatprep.subr.mxu0 0.0
    %137 = vmatpush1.msra.mxu0 0.0
    %138 = vmatprep.subr.mxu0 0.0
    %139 = vmatpush1.msra.mxu0 0.0
    %140 = vmatprep.subr.mxu0 0.0
    %141 = vmatpush1.msra.mxu0 0.0
    %142 = vmatprep.subr.mxu0 0.0
    %143 = vmatpush1.msra.mxu0 0.0
    %144 = vmatprep.subr.mxu0 0.0
    %145 = vmatpush1.msra.mxu0 0.0
    %146 = vmatprep.subr.mxu0 0.0
    %147 = vmatpush1.msra.mxu0 0.0
    %148 = vmatprep.subr.mxu0 0.0
    %149 = vmatpush1.msra.mxu0 0.0
    %150 = vmatprep.subr.mxu0 0.0
    %151 = vmatpush1.msra.mxu0 0.0
    %152 = vmatprep.subr.mxu0 0.0
    %153 = vmatpush1.msra.mxu0 0.0
    %154 = vmatprep.subr.mxu0 0.0
    %155 = vmatpush1.msra.mxu0 0.0
    %156 = vmatprep.mubr.f32.mxu0 0.0
    %157 = vmatmul.mubr.f32.gmra.mrb[0].mxu0 %v84
    %v158 = vpop.f32.mrb[0].mxu0
    %v159 = vadd.f32 0.0, %v158
    %v160 = vpop.f32.mrb[0].mxu0
    %v161 = vadd.f32 0.0, %v160
    %162 = vmatprep.mubr.f32.mxu0 0.0
    %163 = vmatmul.mubr.f32.gmra.mrb[0].mxu0 %v87
    %v164 = vpop.f32.mrb[0].mxu0
    %v165 = vadd.f32 0.0, %v164
    %v166 = vpop.f32.mrb[0].mxu0
    %v167 = vadd.f32 0.0, %v166
    %168 = vmatprep.mubr.f32.mxu0 0.0
    %169 = vmatmul.mubr.f32.gmra.mrb[0].mxu0 %v90
    %v170 = vpop.f32.mrb[0].mxu0
    %v171 = vadd.f32 0.0, %v170
    %v172 = vpop.f32.mrb[0].mxu0
    %v173 = vadd.f32 0.0, %v172
    %174 = vdwg.mxu0
    %v175 = vmul.f32 %v159, %v159
    %v176 = vmul.f32 %v161, %v161
    %v177 = vmul.f32 %v165, %v165
    %v178 = vmul.f32 %v167, %v167
    %v179 = vmul.f32 %v171, %v171
    %v180 = vmul.f32 %v173, %v173
    %v181 = vld [vmem:[#allocation2] sm:$0xff]
    %v182 = vld [vmem:[#allocation2 + $0x8] sm:$0xff]
    %v183 = vld [vmem:[#allocation2 + $0x10] sm:$0xff]
    %v184 = vld [vmem:[#allocation8] sm:$0xff]
    %v185 = vld [vmem:[#allocation8 + $0x8] sm:$0xff]
    %v186 = vld [vmem:[#allocation8 + $0x10] sm:$0xff]
    %v187 = vld [vmem:[#allocation8 + $0x18] sm:$0xff]
    %v188 = vld [vmem:[#allocation8 + $0x20] sm:$0xff]
    %v189 = vld [vmem:[#allocation8 + $0x28] sm:$0xff]
    %v190 = vld [vmem:[#allocation8 + $0x30] sm:$0xff]
    %v191 = vld [vmem:[#allocation8 + $0x38] sm:$0xff]
    %v192 = vld [vmem:[#allocation8 + $0x40] sm:$0xff]
    %v193 = vld [vmem:[#allocation8 + $0x48] sm:$0xff]
    %v194 = vld [vmem:[#allocation8 + $0x50] sm:$0xff]
    %v195 = vld [vmem:[#allocation8 + $0x58] sm:$0xff]
    %v196 = vld [vmem:[#allocation8 + $0x60] sm:$0xff]
    %v197 = vld [vmem:[#allocation8 + $0x68] sm:$0xff]
    %v198 = vld [vmem:[#allocation8 + $0x70] sm:$0xff]
    %v199 = vld [vmem:[#allocation8 + $0x78] sm:$0xff]
    %v200 = vld [vmem:[#allocation8 + $0x80] sm:$0xff]
    %v201 = vld [vmem:[#allocation8 + $0x88] sm:$0xff]
    %v202 = vld [vmem:[#allocation8 + $0x90] sm:$0xff]
    %v203 = vld [vmem:[#allocation8 + $0x98] sm:$0xff]
    %v204 = vld [vmem:[#allocation8 + $0xa0] sm:$0xff]
    %v205 = vld [vmem:[#allocation8 + $0xa8] sm:$0xff]
    %v206 = vld [vmem:[#allocation8 + $0xb0] sm:$0xff]
    %v207 = vld [vmem:[#allocation8 + $0xb8] sm:$0xff]
    %v208 = vld [vmem:[#allocation8 + $0xc0] sm:$0xff]
    %v209 = vld [vmem:[#allocation8 + $0xc8] sm:$0xff]
    %v210 = vld [vmem:[#allocation8 + $0xd0] sm:$0xff]
    %v211 = vld [vmem:[#allocation8 + $0xd8] sm:$0xff]
    %v212 = vld [vmem:[#allocation8 + $0xe0] sm:$0xff]
    %v213 = vld [vmem:[#allocation8 + $0xe8] sm:$0xff]
    %v214 = vld [vmem:[#allocation8 + $0xf0] sm:$0xff]
    %v215 = vld [vmem:[#allocation8 + $0xf8] sm:$0xff]
    %216 = vmatprep.subr.mxu0 0.0
    %217 = vmatpush1.msra.mxu0 %v184
    %218 = vmatprep.subr.mxu0 0.0
    %219 = vmatpush1.msra.mxu0 %v185
    %220 = vmatprep.subr.mxu0 0.0
    %221 = vmatpush1.msra.mxu0 %v186
    %222 = vmatprep.subr.mxu0 0.0
    %223 = vmatpush1.msra.mxu0 %v187
    %224 = vmatprep.subr.mxu0 0.0
    %225 = vmatpush1.msra.mxu0 %v188
    %226 = vmatprep.subr.mxu0 0.0
    %227 = vmatpush1.msra.mxu0 %v189
    %228 = vmatprep.subr.mxu0 0.0
    %229 = vmatpush1.msra.mxu0 %v190
    %230 = vmatprep.subr.mxu0 0.0
    %231 = vmatpush1.msra.mxu0 %v191
    %232 = vmatprep.subr.mxu0 0.0
    %233 = vmatpush1.msra.mxu0 %v192
    %234 = vmatprep.subr.mxu0 0.0
    %235 = vmatpush1.msra.mxu0 %v193
    %236 = vmatprep.subr.mxu0 0.0
    %237 = vmatpush1.msra.mxu0 %v194
    %238 = vmatprep.subr.mxu0 0.0
    %239 = vmatpush1.msra.mxu0 %v195
    %240 = vmatprep.subr.mxu0 0.0
    %241 = vmatpush1.msra.mxu0 %v196
    %242 = vmatprep.subr.mxu0 0.0
    %243 = vmatpush1.msra.mxu0 %v197
    %244 = vmatprep.subr.mxu0 0.0
    %245 = vmatpush1.msra.mxu0 %v198
    %246 = vmatprep.subr.mxu0 0.0
    %247 = vmatpush1.msra.mxu0 %v199
    %248 = vmatprep.subr.mxu0 0.0
    %249 = vmatpush1.msra.mxu0 %v200
    %250 = vmatprep.subr.mxu0 0.0
    %251 = vmatpush1.msra.mxu0 %v201
    %252 = vmatprep.subr.mxu0 0.0
    %253 = vmatpush1.msra.mxu0 %v202
    %254 = vmatprep.subr.mxu0 0.0
    %255 = vmatpush1.msra.mxu0 %v203
    %256 = vmatprep.subr.mxu0 0.0
    %257 = vmatpush1.msra.mxu0 %v204
    %258 = vmatprep.subr.mxu0 0.0
    %259 = vmatpush1.msra.mxu0 %v205
    %260 = vmatprep.subr.mxu0 0.0
    %261 = vmatpush1.msra.mxu0 %v206
    %262 = vmatprep.subr.mxu0 0.0
    %263 = vmatpush1.msra.mxu0 %v207
    %264 = vmatprep.subr.mxu0 0.0
    %265 = vmatpush1.msra.mxu0 %v208
    %266 = vmatprep.subr.mxu0 0.0
    %267 = vmatpush1.msra.mxu0 %v209
    %268 = vmatprep.subr.mxu0 0.0
    %269 = vmatpush1.msra.mxu0 %v210
    %270 = vmatprep.subr.mxu0 0.0
    %271 = vmatpush1.msra.mxu0 %v211
    %272 = vmatprep.subr.mxu0 0.0
    %273 = vmatpush1.msra.mxu0 %v212
    %274 = vmatprep.subr.mxu0 0.0
    %275 = vmatpush1.msra.mxu0 %v213
    %276 = vmatprep.subr.mxu0 0.0
    %277 = vmatpush1.msra.mxu0 %v214
    %278 = vmatprep.subr.mxu0 0.0
    %279 = vmatpush1.msra.mxu0 %v215
    %280 = vmatprep.mubr.f32.mxu0 %v176
    %281 = vmatmul.mubr.f32.gmra.mrb[0].mxu0 %v175
    %v282 = vpop.f32.mrb[0].mxu0
    %v283 = vadd.f32 0.0, %v282
    %v284 = vpop.f32.mrb[0].mxu0
    %285 = vmatprep.mubr.f32.mxu0 %v178
    %286 = vmatmul.mubr.f32.gmra.mrb[0].mxu0 %v177
    %v287 = vpop.f32.mrb[0].mxu0
    %v288 = vadd.f32 0.0, %v287
    %v289 = vpop.f32.mrb[0].mxu0
    %290 = vmatprep.mubr.f32.mxu0 %v180
    %291 = vmatmul.mubr.f32.gmra.mrb[0].mxu0 %v179
    %v292 = vpop.f32.mrb[0].mxu0
    %v293 = vadd.f32 0.0, %v292
    %v294 = vpop.f32.mrb[0].mxu0
    %295 = vdwg.mxu0
    %v296 = vadd.f32 %v181, %v283
    %v297 = vadd.f32 %v182, %v288
    %v298 = vadd.f32 %v183, %v293
    %299 = vst [vmem:[#allocation2] sm:$0xff] %v296
    %300 = vst [vmem:[#allocation2 + $0x8] sm:$0xff] %v297
    %301 = vst [vmem:[#allocation2 + $0x10] sm:$0xff] %v298
    // Predicated region
    $region30: #{tpu_custom_call.1} parent=1 // pred_check
      %p302 = pneg %p56
    $region31: #{tpu_custom_call.1} parent=1 // pred_check_branch
      %304 = sbr.rel (%p302) target = $region33
    $region32: #{tpu_custom_call.1} parent=1 // pred_region
      %v305 = vld [vmem:[#allocation2] sm:$0xff]
      %v306 = vld [vmem:[#allocation2 + $0x8] sm:$0xff]
      %v307 = vld [vmem:[#allocation2 + $0x10] sm:$0xff]
      %308 = vst [vmem:[#allocation9] sm:$0xff] %v305
      %309 = vst [vmem:[#allocation9 + $0x8] sm:$0xff] %v306
      %310 = vst [vmem:[#allocation9 + $0x10] sm:$0xff] %v307
    $region33: #{tpu_custom_call.1} parent=1 // pred_fallthru
      _
    // Predicated region
    $region34: #{tpu_custom_call.1} parent=1 // pred_check
      _
    $region35: #{tpu_custom_call.1} parent=1 // pred_check_branch
      %312 = sbr.rel (0) target = $region37
    $region36: #{tpu_custom_call.1} parent=1 // pred_region
      %s314 = ssub.s32 384, 384
      %315 = vsyncadd [#allocation5], %s314
      %s316 = sshll.u32 [#allocation9], 4
      %s317 = int_to_ptr.vmem [resolvable:$true] %s316
      %322 = dma.vmem_to_hbm [thread:$0]  %s317, 384, %s3, [#allocation5], 128, 128, 8
    $region37: #{tpu_custom_call.1} parent=1 // pred_fallthru
      _
    // Predicated region
    $region38: #{tpu_custom_call.1} parent=1 // pred_check
      _
    $region39: #{tpu_custom_call.1} parent=1 // pred_check_branch
      %324 = sbr.rel (0) target = $region41
    $region40: #{tpu_custom_call.1} parent=1 // pred_region
      %325 = dma.done [#allocation5], 384
    $region41: #{tpu_custom_call.1} parent=1 // pred_fallthru
      _
    %326 = vsyncpa [#allocation4], 1
    %327 = vsyncpa [#allocation7], 1
    %328 = vsyncpa [#allocation5], 1

</llo_original>
